<compile_context>
chip_gen: v5e
topology: v5e:2x2
jax: 0.10.0
libtpu: 0.0.40
codegen_flags: <defaults>
</compile_context>

<pallas_src>
import numpy as np
import jax
import jax.numpy as jnp
from jax import lax
from jax.experimental import pallas as pl
from jax.experimental.pallas import tpu as pltpu

PARAMS = {
    'maxpoolz': 1, 'maxpoolxy': 7, 'maxpoolpadz': 0, 'maxpoolpadxy': 2,
    'convz': 1, 'convxy': 3, 'convsigmaxy': 3, 'convsigmaz': 1,
    'convpadz': 0, 'convpadxy': 1, 'imgbias': 0.0, 'depth_bias': 0.2,
    'obj_ratio': 0.8, 'bg_clr': 0.0, 'resolution': 112, 'depth': 8,
}
# TODO(synk): depth_bias / obj_ratio / bg_clr / imgbias exist in params but are
# unused by the PyTorch forward; they are intentionally not applied here either.


def get2d_gaussian_kernel(ksize, sigma):
    center = ksize // 2
    xs = np.arange(ksize, dtype=np.float32) - center
    k1 = np.exp(-xs ** 2 / (2 * sigma ** 2))
    k = np.outer(k1, k1)
    return k / k.sum()


def get3d_gaussian_kernel(ksize, depth, sigma, zsigma):
    k2 = get2d_gaussian_kernel(ksize, sigma)
    zs = np.arange(depth, dtype=np.float32) - depth // 2
    zk = np.exp(-zs ** 2 / (2 * zsigma ** 2))
    k3 = np.repeat(k2[None, :, :], depth, axis=0) * zk[:, None, None]
    return (k3 / k3.sum()).astype(np.float32)


def _round_up(n, m):
    return ((n + m - 1) // m) * m


def make_grid2image(B, D, H, W, params=PARAMS):
    mpk, mpp = params['maxpoolxy'], params['maxpoolpadxy']
    ck, cp = params['convxy'], params['convpadxy']
    # The streaming-over-depth design requires no pooling/conv coupling across z.
    assert params['maxpoolz'] == 1 and params['maxpoolpadz'] == 0
    assert params['convz'] == 1 and params['convpadz'] == 0
    assert mpk == 7 and mpp == 2 and ck == 3 and cp == 1

    Hm, Wm = H + 2 * mpp - mpk + 1, W + 2 * mpp - mpk + 1    # output H', W'
    # Padded slab: halo of mpp+1 = 3 on every side, aligned to (8, 128).
    Hp = _round_up(H + 2 * (mpp + 1), 8)
    Wp = _round_up(W + 2 * (mpp + 1), 128)
    Hs, Ws = Hp - (mpk - 1), Wp - (mpk - 1)      # sliding-max canvas
    Ho, Wo = Hs - (ck - 1), Ws - (ck - 1)        # conv canvas == kernel output block
    assert Ho == _round_up(Hm, 8) and Ho >= Hm and Wo >= Wm
    assert Hs >= Hm + 2 and Ws >= Wm + 2

    # 1D Gaussian factor (the 3x3 kernel is an outer product; z factor is 1 for convz=1).
    k1 = np.exp(-(np.arange(ck, dtype=np.float64) - ck // 2) ** 2
                / (2.0 * params['convsigmaxy'] ** 2))
    w1d = k1 / k1.sum()
    W0, W1 = float(w1d[0]), float(w1d[1])        # w1d[2] == w1d[0]

    def kernel(x_ref, o_ref):
        # Loop-invariant validity masks (hoisted out of the depth loop).
        # Canvas row/col 0 and Hm+1/Wm+1 become the conv zero ring via the mask.
        r_mp = lax.broadcasted_iota(jnp.int32, (Hs, Ws), 0)
        c_mp = lax.broadcasted_iota(jnp.int32, (Hs, Ws), 1)
        valid_mp = (r_mp >= 1) & (r_mp <= Hm) & (c_mp >= 1) & (c_mp <= Wm)
        r_im = lax.broadcasted_iota(jnp.int32, (Ho, Wo), 0)
        c_im = lax.broadcasted_iota(jnp.int32, (Ho, Wo), 1)
        valid_im = (r_im < Hm) & (c_im < Wm)

        def slab(d, acc):
            x = x_ref[d]                                     # (Hp, Wp), -inf halo
            # Separable 7-wide sliding max, log-doubling (shifts 1, 2, 3 per axis).
            t = jnp.maximum(x[:, :-1], x[:, 1:])
            t = jnp.maximum(t[:, :-2], t[:, 2:])
            t = jnp.maximum(t[:, :-3], t[:, 3:])
            t = jnp.maximum(t[:-1, :], t[1:, :])
            t = jnp.maximum(t[:-2, :], t[2:, :])
            sm = jnp.maximum(t[:-3, :], t[3:, :])            # (Hs, Ws)
            # Zero outside the valid maxpool region == Conv3d zero padding.
            mp = jnp.where(valid_mp, sm, 0.0)
            # Separable 3x3 Gaussian (symmetric taps factored: 2 muls + 3 adds / pass).
            ch = W0 * (mp[:, :-2] + mp[:, 2:]) + W1 * mp[:, 1:-1]    # (Hs, Wo)
            cv = W0 * (ch[:-2, :] + ch[2:, :]) + W1 * ch[1:-1, :]    # (Ho, Wo)
            return jnp.maximum(acc, cv)                      # running depth max

        acc = lax.fori_loop(
            0, D, slab, jnp.full((Ho, Wo), -jnp.inf, dtype=jnp.float32))

        # Per-image normalization: one scalar divide, then a broadcast multiply.
        mx = jnp.max(jnp.where(valid_im, acc, -jnp.inf))
        inv = 1.0 / mx
        o_ref[...] = 1.0 - acc * inv

    call = pl.pallas_call(
        kernel,
        out_shape=jax.ShapeDtypeStruct((B, Ho, Wo), jnp.float32),
        grid=(B,),
        in_specs=[pl.BlockSpec((None, D, Hp, Wp), lambda b: (b, 0, 0, 0))],
        out_specs=pl.BlockSpec((None, Ho, Wo), lambda b: (b, 0, 0)),
        compiler_params=pltpu.CompilerParams(
            dimension_semantics=("parallel",)),
    )

    def forward(x):
        # One combined pad: -inf halo for MaxPool3d + (8,128) alignment padding.
        xp = jnp.pad(
            x.astype(jnp.float32),
            ((0, 0), (0, 0),
             (mpp + 1, Hp - H - (mpp + 1)),
             (mpp + 1, Wp - W - (mpp + 1))),
            constant_values=-jnp.inf)
        raw = call(xp)                                       # (B, Ho, Wo), 1 channel
        img = raw[:, :Hm, :Wm]
        return jnp.tile(img[:, None, :, :], (1, 3, 1, 1))    # NCHW, 3 channels

    return forward


def reference(x, params=PARAMS):
    """Plain-JAX reference mirroring the PyTorch forward."""
    xp = x.astype(jnp.float32)[:, None]  # (B,1,D,H,W)
    mp = jax.lax.reduce_window(
        xp, -jnp.inf, jax.lax.max,
        window_dimensions=(1, 1, params['maxpoolz'],
                           params['maxpoolxy'], params['maxpoolxy']),
        window_strides=(1, 1, 1, 1, 1),
        padding=((0, 0), (0, 0), (params['maxpoolpadz'],) * 2,
                 (params['maxpoolpadxy'],) * 2, (params['maxpoolpadxy'],) * 2))
    w = jnp.asarray(get3d_gaussian_kernel(
        params['convxy'], params['convz'],
        params['convsigmaxy'], params['convsigmaz']))[None, None]  # (1,1,cz,ck,ck)
    conv = jax.lax.conv_general_dilated(
        mp, w, window_strides=(1, 1, 1),
        padding=((params['convpadz'],) * 2,
                 (params['convpadxy'],) * 2, (params['convpadxy'],) * 2),
        dimension_numbers=('NCDHW', 'OIDHW', 'NCDHW'))
    img = jnp.max(conv, axis=2)                                   # (B,1,H',W')
    mx = jnp.max(jnp.max(img, axis=-1), axis=-1)[:, :, None, None]
    img = 1.0 - img / mx
    return jnp.tile(img, (1, 3, 1, 1))


if __name__ == "__main__":
    # Small deterministic check.
    B, D, H, W = 2, 4, 16, 16
    key = jax.random.PRNGKey(0)
    x = jax.random.uniform(key, (B, D, H, W), dtype=jnp.float32)

    fwd = make_grid2image(B, D, H, W)
    out = jax.block_until_ready(fwd(x))
    ref = jax.block_until_ready(reference(x))
    assert out.shape == ref.shape == (B, 3, H - 2, W - 2), (out.shape, ref.shape)
    np.testing.assert_allclose(np.asarray(out), np.asarray(ref),
                               rtol=1e-4, atol=1e-5)

    # Production-resolution check (depth=8, 112x112) — cheap, validates masking
    # and layout at the real shapes.
    B2, D2, H2, W2 = 2, PARAMS['depth'], PARAMS['resolution'], PARAMS['resolution']
    x2 = jax.random.uniform(jax.random.PRNGKey(1), (B2, D2, H2, W2),
                            dtype=jnp.float32)
    fwd2 = make_grid2image(B2, D2, H2, W2)
    out2 = jax.block_until_ready(fwd2(x2))
    ref2 = jax.block_until_ready(reference(x2))
    np.testing.assert_allclose(np.asarray(out2), np.asarray(ref2),
                               rtol=1e-4, atol=1e-5)

    print("KERNEL_OK")
</pallas_src>

<mosaic_0001>
module attributes {stable_mosaic.version = 11 : i64} {
  func.func @kernel(%arg0: i32, %arg1: memref<1x4x24x128xf32, #tpu.memory_space<vmem>>, %arg2: memref<1x16x120xf32, #tpu.memory_space<vmem>>) attributes {dimension_semantics = [#tpu.dimension_semantics<parallel>], iteration_bounds = array<i64: 2>, scalar_prefetch = 0 : i64, scratch_operands = 0 : i64, tpu.core_type = #tpu.core_type<tc>, window_params = [{transform_indices = @transform_0, window_bounds = array<i64: 1, 4, 24, 128>}, {transform_indices = @transform_1, window_bounds = array<i64: 1, 16, 120>}]} {
    %0 = tpu.iota {dimensions = array<i32: 0>} : vector<18x122xi32>
    %1 = tpu.iota {dimensions = array<i32: 1>} : vector<18x122xi32>
    %c1_i32 = arith.constant 1 : i32
    %2 = vector.broadcast %c1_i32 : i32 to vector<18x122xi32>
    %3 = arith.cmpi sge, %0, %2 : vector<18x122xi32>
    %c14_i32 = arith.constant 14 : i32
    %4 = vector.broadcast %c14_i32 : i32 to vector<18x122xi32>
    %5 = arith.cmpi sle, %0, %4 : vector<18x122xi32>
    %6 = arith.andi %3, %5 : vector<18x122xi1>
    %c1_i32_0 = arith.constant 1 : i32
    %7 = vector.broadcast %c1_i32_0 : i32 to vector<18x122xi32>
    %8 = arith.cmpi sge, %1, %7 : vector<18x122xi32>
    %9 = arith.andi %6, %8 : vector<18x122xi1>
    %c14_i32_1 = arith.constant 14 : i32
    %10 = vector.broadcast %c14_i32_1 : i32 to vector<18x122xi32>
    %11 = arith.cmpi sle, %1, %10 : vector<18x122xi32>
    %12 = arith.andi %9, %11 : vector<18x122xi1>
    %13 = tpu.iota {dimensions = array<i32: 0>} : vector<16x120xi32>
    %14 = tpu.iota {dimensions = array<i32: 1>} : vector<16x120xi32>
    %c14_i32_2 = arith.constant 14 : i32
    %15 = vector.broadcast %c14_i32_2 : i32 to vector<16x120xi32>
    %16 = arith.cmpi slt, %13, %15 : vector<16x120xi32>
    %c14_i32_3 = arith.constant 14 : i32
    %17 = vector.broadcast %c14_i32_3 : i32 to vector<16x120xi32>
    %18 = arith.cmpi slt, %14, %17 : vector<16x120xi32>
    %19 = arith.andi %16, %18 : vector<16x120xi1>
    %cst = arith.constant 0xFF800000 : f32
    %20 = vector.broadcast %cst : f32 to vector<16x120xf32>
    %c0_i32 = arith.constant 0 : i32
    %c4_i32 = arith.constant 4 : i32
    %21 = arith.addi %c0_i32, %c4_i32 : i32
    %c1_i32_4 = arith.constant 1 : i32
    %22 = scf.for %arg3 = %c0_i32 to %21 step %c1_i32_4 iter_args(%arg4 = %20) -> (vector<16x120xf32>)  : i32 {
      %c0_12 = arith.constant 0 : index
      %37 = arith.index_cast %arg3 : i32 to index
      %c0_13 = arith.constant 0 : index
      %c0_14 = arith.constant 0 : index
      %38 = vector.load %arg1[%c0_12, %37, %c0_13, %c0_14] : memref<1x4x24x128xf32, #tpu.memory_space<vmem>>, vector<1x1x24x128xf32>
      %39 = vector.shape_cast %38 : vector<1x1x24x128xf32> to vector<24x128xf32>
      %40 = vector.extract_strided_slice %39 {offsets = [0, 0], sizes = [24, 127], strides = [1, 1]} : vector<24x128xf32> to vector<24x127xf32>
      %41 = vector.extract_strided_slice %39 {offsets = [0, 1], sizes = [24, 127], strides = [1, 1]} : vector<24x128xf32> to vector<24x127xf32>
      %42 = arith.maximumf %40, %41 : vector<24x127xf32>
      %43 = vector.extract_strided_slice %42 {offsets = [0, 0], sizes = [24, 125], strides = [1, 1]} : vector<24x127xf32> to vector<24x125xf32>
      %44 = vector.extract_strided_slice %42 {offsets = [0, 2], sizes = [24, 125], strides = [1, 1]} : vector<24x127xf32> to vector<24x125xf32>
      %45 = arith.maximumf %43, %44 : vector<24x125xf32>
      %46 = vector.extract_strided_slice %45 {offsets = [0, 0], sizes = [24, 122], strides = [1, 1]} : vector<24x125xf32> to vector<24x122xf32>
      %47 = vector.extract_strided_slice %45 {offsets = [0, 3], sizes = [24, 122], strides = [1, 1]} : vector<24x125xf32> to vector<24x122xf32>
      %48 = arith.maximumf %46, %47 : vector<24x122xf32>
      %49 = vector.extract_strided_slice %48 {offsets = [0, 0], sizes = [23, 122], strides = [1, 1]} : vector<24x122xf32> to vector<23x122xf32>
      %50 = vector.extract_strided_slice %48 {offsets = [1, 0], sizes = [23, 122], strides = [1, 1]} : vector<24x122xf32> to vector<23x122xf32>
      %51 = arith.maximumf %49, %50 : vector<23x122xf32>
      %52 = vector.extract_strided_slice %51 {offsets = [0, 0], sizes = [21, 122], strides = [1, 1]} : vector<23x122xf32> to vector<21x122xf32>
      %53 = vector.extract_strided_slice %51 {offsets = [2, 0], sizes = [21, 122], strides = [1, 1]} : vector<23x122xf32> to vector<21x122xf32>
      %54 = arith.maximumf %52, %53 : vector<21x122xf32>
      %55 = vector.extract_strided_slice %54 {offsets = [0, 0], sizes = [18, 122], strides = [1, 1]} : vector<21x122xf32> to vector<18x122xf32>
      %56 = vector.extract_strided_slice %54 {offsets = [3, 0], sizes = [18, 122], strides = [1, 1]} : vector<21x122xf32> to vector<18x122xf32>
      %57 = arith.maximumf %55, %56 : vector<18x122xf32>
      %cst_15 = arith.constant 0.000000e+00 : f32
      %58 = vector.broadcast %cst_15 : f32 to vector<18x122xf32>
      %59 = arith.select %12, %57, %58 : vector<18x122xi1>, vector<18x122xf32>
      %60 = vector.extract_strided_slice %59 {offsets = [0, 0], sizes = [18, 120], strides = [1, 1]} : vector<18x122xf32> to vector<18x120xf32>
      %61 = vector.extract_strided_slice %59 {offsets = [0, 2], sizes = [18, 120], strides = [1, 1]} : vector<18x122xf32> to vector<18x120xf32>
      %62 = arith.addf %60, %61 : vector<18x120xf32>
      %cst_16 = arith.constant 0.327104419 : f32
      %63 = vector.broadcast %cst_16 : f32 to vector<18x120xf32>
      %64 = arith.mulf %63, %62 : vector<18x120xf32>
      %65 = vector.extract_strided_slice %59 {offsets = [0, 1], sizes = [18, 120], strides = [1, 1]} : vector<18x122xf32> to vector<18x120xf32>
      %cst_17 = arith.constant 0.345791161 : f32
      %66 = vector.broadcast %cst_17 : f32 to vector<18x120xf32>
      %67 = arith.mulf %66, %65 : vector<18x120xf32>
      %68 = arith.addf %64, %67 : vector<18x120xf32>
      %69 = vector.extract_strided_slice %68 {offsets = [0, 0], sizes = [16, 120], strides = [1, 1]} : vector<18x120xf32> to vector<16x120xf32>
      %70 = vector.extract_strided_slice %68 {offsets = [2, 0], sizes = [16, 120], strides = [1, 1]} : vector<18x120xf32> to vector<16x120xf32>
      %71 = arith.addf %69, %70 : vector<16x120xf32>
      %cst_18 = arith.constant 0.327104419 : f32
      %72 = vector.broadcast %cst_18 : f32 to vector<16x120xf32>
      %73 = arith.mulf %72, %71 : vector<16x120xf32>
      %74 = vector.extract_strided_slice %68 {offsets = [1, 0], sizes = [16, 120], strides = [1, 1]} : vector<18x120xf32> to vector<16x120xf32>
      %cst_19 = arith.constant 0.345791161 : f32
      %75 = vector.broadcast %cst_19 : f32 to vector<16x120xf32>
      %76 = arith.mulf %75, %74 : vector<16x120xf32>
      %77 = arith.addf %73, %76 : vector<16x120xf32>
      %78 = arith.maximumf %arg4, %77 : vector<16x120xf32>
      scf.yield %78 : vector<16x120xf32>
    }
    %c4_i32_5 = arith.constant 4 : i32
    %cst_6 = arith.constant 0xFF800000 : f32
    %23 = vector.broadcast %cst_6 : f32 to vector<16x120xf32>
    %24 = arith.select %19, %22, %23 : vector<16x120xi1>, vector<16x120xf32>
    %25 = vector.shape_cast %24 : vector<16x120xf32> to vector<1x16x120xf32>
    %cst_7 = arith.constant dense<0xFF800000> : vector<1xf32>
    %26 = vector.multi_reduction <maximumf>, %25, %cst_7 [1, 2] : vector<1x16x120xf32> to vector<1xf32>
    %27 = vector.shape_cast %26 : vector<1xf32> to vector<1x1x1xf32>
    %28 = vector.extract %27[0, 0, 0] : f32 from vector<1x1x1xf32>
    %cst_8 = arith.constant 1.000000e+00 : f32
    %29 = arith.divf %cst_8, %28 : f32
    %30 = vector.broadcast %29 : f32 to vector<16x120xf32>
    %31 = arith.mulf %22, %30 : vector<16x120xf32>
    %cst_9 = arith.constant 1.000000e+00 : f32
    %32 = vector.broadcast %cst_9 : f32 to vector<16x120xf32>
    %33 = arith.subf %32, %31 : vector<16x120xf32>
    %c0 = arith.constant 0 : index
    %c0_10 = arith.constant 0 : index
    %c0_11 = arith.constant 0 : index
    %34 = vector.load %arg2[%c0, %c0_10, %c0_11] : memref<1x16x120xf32, #tpu.memory_space<vmem>>, vector<1x16x120xf32>
    %35 = vector.shape_cast %34 : vector<1x16x120xf32> to vector<16x120xf32>
    %36 = vector.shape_cast %33 : vector<16x120xf32> to vector<1x16x120xf32>
    tpu.vector_store %arg2[%c0, %c0_10, %c0_11], %36 {strides = array<i32>} : memref<1x16x120xf32, #tpu.memory_space<vmem>>, vector<1x16x120xf32>,
    return
  }
  func.func @transform_0(%arg0: i32) -> (i32, i32, i32, i32) {
    %c0_i32 = arith.constant 0 : i32
    %c0_i32_0 = arith.constant 0 : i32
    %c0_i32_1 = arith.constant 0 : i32
    %c0_i32_2 = arith.constant 0 : i32
    return %arg0, %c0_i32, %c0_i32_0, %c0_i32_1 : i32, i32, i32, i32
  }
  func.func @transform_1(%arg0: i32) -> (i32, i32, i32) {
    %c0_i32 = arith.constant 0 : i32
    %c0_i32_0 = arith.constant 0 : i32
    %c0_i32_1 = arith.constant 0 : i32
    return %arg0, %c0_i32, %c0_i32_0 : i32, i32, i32
  }
}

</mosaic_0001>

<llo_original>
// kernel: tpu_custom_call.1
$region0: #{tpu_custom_call.1}
  #allocation0 [shape = 'u32[]', space=smem, size = 0x4, offset = 0x4, fixed_abs, tag = 'smem constant byte address 0x4 - core index']
  #allocation1 [shape = 'u32[72,128]{1,0:T(1,128)}', space=vmem, size = 0x9000, scoped, tag = 'internal scratch']
  %s0 = inlined_call_operand.hbm [shape: f32[2,4,24,128], index: 0, kind: input, shape index: {}]
  %s1 = inlined_call_operand.hbm [shape: f32[2,16,120], index: 1, kind: output, shape index: {}]
  %s2 = sld [smem:[#allocation0]]
  $region48: #{tpu_custom_call.1} parent=0
    _
  %s4 = ssub.s32 1, %s2
  %s5 = scalar_select 0, %s4, %s2
  $region1: #{tpu_custom_call.1} parent=0
    #allocation2 [shape = 'u8[98304]{0}', space=vmem, size = 0x18000, scoped, tag = 'input window, operand 0']
    #allocation3 [shape = 's32[2]{0}', space=sflag, size = 0x8, scoped, tag = 'scoped memory for tpu_custom_call.1']
    #allocation4 [shape = 's32[2]{0}', space=sflag, size = 0x8, scoped, tag = 'scoped memory for tpu_custom_call.1']
    #allocation5 [shape = 'u8[16384]{0}', space=vmem, size = 0x4000, scoped, tag = 'output window, operand 0']
    %6 = vsyncpa [#allocation3], 0
    %s7 = scalar_lea.sflag [#allocation3], 1
    %8 = vsyncpa %s7, 0
    %9 = vsyncpa [#allocation4], 0
    %s10 = scalar_lea.sflag [#allocation4], 1
    %11 = vsyncpa %s10, 0
    loop: start=0, step=1, limit=4
    $region2: #{tpu_custom_call.1} parent=1 // loop_pre_header
      _
    $region3: #{tpu_custom_call.1} parent=1 // loop_header
      %s13 = sphi 0, %s17
      %p14 = scmp.ge.s32.totalorder %s13, 4
      %s23 = sphi 0, %s25
      %s26 = sphi 0, %s23
      %s27 = sphi 0, %s26
      %s43 = sphi 0, %s27
      %s49 = sphi 0, %s51
      %s52 = sphi 0, %s49
      %s53 = sphi 0, %s52
      %s69 = sphi 0, %s53
    $region4: #{tpu_custom_call.1} parent=1 // loop_header_branch
      %16 = sbr.rel (%p14) target = $region8
    $region5: #{tpu_custom_call.1} parent=1 // loop_body
      %s18 = ssub.s32 %s13, 1
      %s19 = ssub.s32 %s13, 2
      %s20 = sadd.s32 %s13, 1
      %s21 = ssub.s32 %s13, %s20
      %p22 = scmp.eq.s32.totalorder %s21, 0
      %s24 = sadd.s32 %s23, 1
      %s25 = scalar_select %p22, %s23, %s24
      %p28 = pneg %p22
      %p29 = scmp.eq.s32.totalorder %s13, 1
      %p30 = por %p28, %p29
      %p31 = scmp.ne.s32.totalorder %s23, %s26
      %p32 = scmp.eq.s32.totalorder %s13, 0
      %p33 = por %p31, %p32
      %p34 = scmp.ne.s32.totalorder %s23, %s26
      %p35 = scmp.eq.s32.totalorder %s18, 1
      %p36 = por %p34, %p35
      %p37 = scmp.ne.s32.totalorder %s26, %s27
      %p38 = scmp.eq.s32.totalorder %s18, 0
      %p39 = por %p37, %p38
      %p40 = scmp.ne.s32.totalorder %s26, %s27
      %p41 = scmp.eq.s32.totalorder %s19, 1
      %p42 = por %p40, %p41
      %p44 = scmp.ne.s32.totalorder %s27, %s43
      %p45 = scmp.eq.s32.totalorder %s19, 0
      %p46 = por %p44, %p45
      %s47 = ssub.s32 %s13, %s20
      %p48 = scmp.eq.s32.totalorder %s47, 0
      %s50 = sadd.s32 %s49, 1
      %s51 = scalar_select %p48, %s49, %s50
      %p54 = pneg %p48
      %p55 = scmp.eq.s32.totalorder %s13, 1
      %p56 = por %p54, %p55
      %p57 = scmp.ne.s32.totalorder %s49, %s52
      %p58 = scmp.eq.s32.totalorder %s13, 0
      %p59 = por %p57, %p58
      %p60 = scmp.ne.s32.totalorder %s49, %s52
      %p61 = scmp.eq.s32.totalorder %s18, 1
      %p62 = por %p60, %p61
      %p63 = scmp.ne.s32.totalorder %s52, %s53
      %p64 = scmp.eq.s32.totalorder %s18, 0
      %p65 = por %p63, %p64
      %p66 = scmp.ne.s32.totalorder %s52, %s53
      %p67 = scmp.eq.s32.totalorder %s19, 1
      %p68 = por %p66, %p67
      %p70 = scmp.ne.s32.totalorder %s53, %s69
      %p71 = scmp.eq.s32.totalorder %s19, 0
      %p72 = por %p70, %p71
      %p73 = scmp.le.s32.totalorder 1, %s13
      %p74 = scmp.lt.s32.totalorder %s13, 3
      %p75 = pnand %p73, %p74
      %p76 = pneg %p75
      // Predicated region
      $region9: #{tpu_custom_call.1} parent=5 // pred_check
        _
      $region10: #{tpu_custom_call.1} parent=5 // pred_check_branch
        %78 = sbr.rel (%p75) target = $region12
      $region11: #{tpu_custom_call.1} parent=5 // pred_region
        %s79 = ssub.s32 %s13, 1
      $region12: #{tpu_custom_call.1} parent=5 // pred_fallthru
        _
      %p80 = scmp.lt.s32.totalorder %s13, 2
      // Predicated region
      $region13: #{tpu_custom_call.1} parent=5 // pred_check
        %p81 = pneg %p80
      $region14: #{tpu_custom_call.1} parent=5 // pred_check_branch
        %83 = sbr.rel (%p81) target = $region16
      $region15: #{tpu_custom_call.1} parent=5 // pred_region
        // Predicated region
        $region17: #{tpu_custom_call.1} parent=15 // pred_check
          %p84 = pneg %p33
        $region18: #{tpu_custom_call.1} parent=15 // pred_check_branch
          %86 = sbr.rel (%p84) target = $region20
        $region19: #{tpu_custom_call.1} parent=15 // pred_region
          %s87 = sand.u32 %s23, 1
          %s88 = scalar_lea.sflag [#allocation3], %s87
          %s89 = sand.u32 %s23, 1
          %s90 = smul.addr %s89, 96
          %s91 = scalar_lea.vmem [#allocation2], %s90
          %93 = vsyncadd %s88, 0
          %s94 = smul.addr %s13, 12
          %s95 = smul.addr %s94, 8
          %s96 = scalar_lea.hbm %s0, %s95
          %s97 = sshll.u32 %s96, 4
          %s98 = int_to_ptr.hbm [resolvable:$true] %s97
          %s99 = sshll.u32 %s91, 4
          %s100 = int_to_ptr.vmem [resolvable:$true] %s99
          %105 = dma.hbm_to_vmem [thread:$0]  %s98, 1536, %s100, %s88, 128, 128, 8
        $region20: #{tpu_custom_call.1} parent=15 // pred_fallthru
          _
      $region16: #{tpu_custom_call.1} parent=5 // pred_fallthru
        _
      %p106 = scmp.le.s32.totalorder 1, %s13
      %p107 = scmp.lt.s32.totalorder %s13, 3
      %p108 = pnand %p106, %p107
      %p109 = pneg %p108
      // Predicated region
      $region21: #{tpu_custom_call.1} parent=5 // pred_check
        _
      $region22: #{tpu_custom_call.1} parent=5 // pred_check_branch
        %111 = sbr.rel (%p108) target = $region24
      $region23: #{tpu_custom_call.1} parent=5 // pred_region
        %s112 = ssub.s32 %s13, 1
        %s113 = sand.u32 %s26, 1
        %s114 = scalar_lea.sflag [#allocation3], %s113
        %s115 = sand.u32 %s26, 1
        %s116 = smul.addr %s115, 96
        %s117 = scalar_lea.vmem [#allocation2], %s116
        // Predicated region
        $region25: #{tpu_custom_call.1} parent=23 // pred_check
          %p118 = pneg %p39
        $region26: #{tpu_custom_call.1} parent=23 // pred_check_branch
          %120 = sbr.rel (%p118) target = $region28
        $region27: #{tpu_custom_call.1} parent=23 // pred_region
          %122 = dma.done %s114, 1536
        $region28: #{tpu_custom_call.1} parent=23 // pred_fallthru
          _
        %s123 = sand.u32 %s26, 1
        %s124 = scalar_lea.sflag [#allocation3], %s123
        %s125 = sand.u32 %s26, 1
        %s126 = smul.addr %s125, 96
        %s127 = scalar_lea.vmem [#allocation2], %s126
        %p128 = pneg %p39
        %p129 = pneg %p36
        %p130 = pneg %p65
        %p131 = pneg %p62
        %s132 = sand.u32 %s52, 1
        %s133 = scalar_lea.sflag [#allocation4], %s132
        %s134 = sand.u32 %s52, 1
        %s135 = smul.addr %s134, 16
        %s136 = scalar_lea.vmem [#allocation5], %s135
        %v137 = vlaneseq
        %v138 = vshrl.u32 %v137, 7
        %v139 = vadd.s32 %v138, 8
        %v140 = vadd.s32 %v138, 16
        %v141 = vlaneseq
        %v142 = vand.u32 %v141, 127
        %vm143 = vcmp.ge.s32.totalorder %v138, 1
        %vm144 = vcmp.ge.s32.totalorder %v139, 1
        %vm145 = vcmp.ge.s32.totalorder %v140, 1
        %vm146 = vcmp.le.s32.totalorder %v138, 14
        %vm147 = vcmp.le.s32.totalorder %v139, 14
        %vm148 = vcmp.le.s32.totalorder %v140, 14
        %vm149 = vmand %vm143, %vm146
        %vm150 = vmand %vm144, %vm147
        %vm151 = vmand %vm145, %vm148
        %vm152 = vcmp.ge.s32.totalorder %v142, 1
        %vm153 = vmand %vm149, %vm152
        %vm154 = vmand %vm150, %vm152
        %vm155 = vmand %vm151, %vm152
        %vm156 = vcmp.le.s32.totalorder %v142, 14
        %vm157 = vmand %vm153, %vm156
        %vm158 = vmand %vm154, %vm156
        %vm159 = vmand %vm155, %vm156
        %vm160 = vcmp.lt.s32.totalorder %v138, 14
        %vm161 = vcmp.lt.s32.totalorder %v139, 14
        %vm162 = vcmp.lt.s32.totalorder %v142, 14
        %vm163 = vmand %vm160, %vm162
        %vm164 = vmand %vm161, %vm162
        loop: start=0, step=1, limit=4
        $region29: #{tpu_custom_call.1} parent=23 // loop_pre_header
          _
        $region30: #{tpu_custom_call.1} parent=23 // loop_header
          %s166 = sphi 0, %s170
          %p167 = scmp.ge.s32.totalorder %s166, 4
          %v171 = vphi -inf, %v336
          %v172 = vphi -inf, %v337
        $region31: #{tpu_custom_call.1} parent=23 // loop_header_branch
          %169 = sbr.rel (%p167) target = $region35
        $region32: #{tpu_custom_call.1} parent=23 // loop_body
          %s173 = smul.u32 %s166, 24
          %s174 = scalar_lea.vmem %s117, %s173 [#allocation2]
          %v175 = vld [vmem:[%s174] sm:$0xff]
          %v176 = vld [vmem:[%s174 + $0x8] sm:$0xff]
          %v177 = vld [vmem:[%s174 + $0x10] sm:$0xff]
          %181 = vrot.lane.b32.xlu0 %v175, 127
          %v182 = vpop.permute.xlu0 %181
          %183 = vrot.lane.b32.xlu0 %v176, 127
          %v184 = vpop.permute.xlu0 %183
          %185 = vrot.lane.b32.xlu0 %v177, 127
          %v186 = vpop.permute.xlu0 %185
          %v190 = vmax.f32 %v175, %v182
          %v191 = vmax.f32 %v176, %v184
          %v192 = vmax.f32 %v177, %v186
          %196 = vrot.lane.b32.xlu0 %v190, 126
          %v197 = vpop.permute.xlu0 %196
          %198 = vrot.lane.b32.xlu0 %v191, 126
          %v199 = vpop.permute.xlu0 %198
          %200 = vrot.lane.b32.xlu0 %v192, 126
          %v201 = vpop.permute.xlu0 %200
          %v205 = vmax.f32 %v190, %v197
          %v206 = vmax.f32 %v191, %v199
          %v207 = vmax.f32 %v192, %v201
          %211 = vrot.lane.b32.xlu0 %v205, 125
          %v212 = vpop.permute.xlu0 %211
          %213 = vrot.lane.b32.xlu0 %v206, 125
          %v214 = vpop.permute.xlu0 %213
          %215 = vrot.lane.b32.xlu0 %v207, 125
          %v216 = vpop.permute.xlu0 %215
          %v220 = vmax.f32 %v205, %v212
          %v221 = vmax.f32 %v206, %v214
          %v222 = vmax.f32 %v207, %v216
          %vm226 = vcmask 1046528
          %v227 = vrot.slane %v220, 1
          %v228 = vrot.slane %v221, 1
          %v229 = vsel %vm226, %v227, %v228
          %v230 = vrot.slane %v222, 1
          %v231 = vsel %vm226, %v228, %v230
          %v235 = vmax.f32 %v220, %v229
          %v236 = vmax.f32 %v221, %v231
          %v237 = vmax.f32 %v222, %v230
          %vm241 = vcmask 1045504
          %v242 = vrot.slane %v235, 2
          %v243 = vrot.slane %v236, 2
          %v244 = vsel %vm241, %v242, %v243
          %v245 = vrot.slane %v237, 2
          %v246 = vsel %vm241, %v243, %v245
          %v250 = vmax.f32 %v235, %v244
          %v251 = vmax.f32 %v236, %v246
          %v252 = vmax.f32 %v237, %v245
          %vm256 = vcmask 1044480
          %v257 = vrot.slane %v250, 3
          %v258 = vrot.slane %v251, 3
          %v259 = vsel %vm256, %v257, %v258
          %v260 = vrot.slane %v252, 3
          %v261 = vsel %vm256, %v258, %v260
          %v265 = vmax.f32 %v250, %v259
          %v266 = vmax.f32 %v251, %v261
          %v267 = vmax.f32 %v252, %v260
          %v268 = vsel %vm157, %v265, 0.0
          %v269 = vsel %vm158, %v266, 0.0
          %v270 = vsel %vm159, %v267, 0.0
          %274 = vrot.lane.b32.xlu0 %v268, 126
          %v275 = vpop.permute.xlu0 %274
          %276 = vrot.lane.b32.xlu0 %v269, 126
          %v277 = vpop.permute.xlu0 %276
          %278 = vrot.lane.b32.xlu0 %v270, 126
          %v279 = vpop.permute.xlu0 %278
          %v283 = vadd.f32 %v268, %v275
          %v284 = vadd.f32 %v269, %v277
          %v285 = vadd.f32 %v270, %v279
          %v286 = vmul.f32 %v283, 0.32710442
          %v287 = vmul.f32 %v284, 0.32710442
          %v288 = vmul.f32 %v285, 0.32710442
          %v289 = vmul.f32 %v268, 0.34579116
          %v290 = vmul.f32 %v269, 0.34579116
          %v291 = vmul.f32 %v270, 0.34579116
          %295 = vrot.lane.b32.xlu0 %v289, 127
          %v296 = vpop.permute.xlu0 %295
          %297 = vrot.lane.b32.xlu0 %v290, 127
          %v298 = vpop.permute.xlu0 %297
          %299 = vrot.lane.b32.xlu0 %v291, 127
          %v300 = vpop.permute.xlu0 %299
          %v304 = vadd.f32 %v286, %v296
          %v305 = vadd.f32 %v287, %v298
          %v306 = vadd.f32 %v288, %v300
          %v310 = vrot.slane %v304, 2
          %v311 = vrot.slane %v305, 2
          %v312 = vsel %vm241, %v310, %v311
          %v313 = vrot.slane %v306, 2
          %v314 = vsel %vm241, %v311, %v313
          %v317 = vadd.f32 %v304, %v312
          %v318 = vadd.f32 %v305, %v314
          %v319 = vmul.f32 %v317, 0.32710442
          %v320 = vmul.f32 %v318, 0.32710442
          %v321 = vmul.f32 %v304, 0.34579116
          %v322 = vmul.f32 %v305, 0.34579116
          %v323 = vmul.f32 %v306, 0.34579116
          %v327 = vrot.slane %v321, 1
          %v328 = vrot.slane %v322, 1
          %v329 = vsel %vm226, %v327, %v328
          %v330 = vrot.slane %v323, 1
          %v331 = vsel %vm226, %v328, %v330
          %v334 = vadd.f32 %v319, %v329
          %v335 = vadd.f32 %v320, %v331
          %v336 = vmax.f32 %v171, %v334
          %v337 = vmax.f32 %v172, %v335
        $region33: #{tpu_custom_call.1} parent=23 // loop_footer
          %s170 = sadd.s32 1, %s166
        $region34: #{tpu_custom_call.1} parent=23 // loop_footer_branch
          %165 = sbr.rel target = $region30
        $region35: #{tpu_custom_call.1} parent=23 // loop_exit
          _
        %v338 = vsel %vm163, %v171, -inf
        %v339 = vsel %vm164, %v172, -inf
        %vm340 = vcmask 982016
        %v341 = vsel %vm340, %v338, -inf
        %v342 = vsel %vm340, %v339, -inf
        %v343 = vmax.f32 %v341, %v342
        %344 = vmax.xlane.f32.xlu0 %v343
        %v345 = vpop.xlane.xlu0 %344
        %v346 = vrot.slane %v345, 4
        %v347 = vmax.f32 %v345, %v346
        %v348 = vrot.slane %v347, 2
        %v349 = vmax.f32 %v347, %v348
        %v350 = vrot.slane %v349, 1
        %v351 = vmax.f32 %v349, %v350
        %s352 = vtos %v351
        %v353 = vstv %s352
        %v354 = vrcp.pop %v353
        %v355 = vmul.f32 %v353, %v354
        %v356 = vsub.f32 1.0, %v355
        %v357 = vmul.f32 %v354, %v356
        %v358 = vadd.f32 %v354, %v357
        %vm359 = vweird.f32 %v353
        %vm360 = vweird.f32 %v354
        %vm361 = vmor %vm359, %vm360
        %v362 = vsel %vm361, %v354, %v358
        %v363 = vand.u32 2147483647, %v353
        %vm364 = vcmp.eq.f32.partialorder %v363, 8.507059e+37
        %v365 = vand.u32 %v353, 2147483648
        %v366 = vor.u32 1.1754944e-38, %v365
        %v367 = vsel %vm364, %v366, %v362
        %s368 = vtos %v367
        %v369 = vstv %s368
        %v370 = vmul.f32 %v171, %v369
        %v371 = vmul.f32 %v172, %v369
        %v372 = vsub.f32 1.0, %v370
        %v373 = vsub.f32 1.0, %v371
        %374 = vst.msk [vmem:[%s136] sm:$0xff] %vm340, %v372
        %375 = vst.msk [vmem:[%s136 + $0x8] sm:$0xff] %vm340, %v373
        %s376 = sand.u32 %s52, 1
        %s377 = scalar_lea.sflag [#allocation4], %s376
        %s378 = sand.u32 %s52, 1
        %s379 = smul.addr %s378, 16
        %s380 = scalar_lea.vmem [#allocation5], %s379
        // Predicated region
        $region36: #{tpu_custom_call.1} parent=23 // pred_check
          %p381 = pneg %p62
        $region37: #{tpu_custom_call.1} parent=23 // pred_check_branch
          %383 = sbr.rel (%p381) target = $region39
        $region38: #{tpu_custom_call.1} parent=23 // pred_region
          %385 = vsyncadd %s377, 0
          %s386 = smul.addr %s18, 2
          %s387 = smul.addr %s386, 8
          %s388 = scalar_lea.hbm %s1, %s387
          %s389 = sshll.u32 %s380, 4
          %s390 = int_to_ptr.vmem [resolvable:$true] %s389
          %s391 = sshll.u32 %s388, 4
          %s392 = int_to_ptr.hbm [resolvable:$true] %s391
          %397 = dma.vmem_to_hbm [thread:$0]  %s390, 256, %s392, %s377, 128, 128, 8
        $region39: #{tpu_custom_call.1} parent=23 // pred_fallthru
          _
      $region24: #{tpu_custom_call.1} parent=5 // pred_fallthru
        _
      %p398 = scmp.le.s32.totalorder 2, %s13
      // Predicated region
      $region40: #{tpu_custom_call.1} parent=5 // pred_check
        %p399 = pneg %p398
      $region41: #{tpu_custom_call.1} parent=5 // pred_check_branch
        %401 = sbr.rel (%p399) target = $region43
      $region42: #{tpu_custom_call.1} parent=5 // pred_region
        %s402 = ssub.s32 %s13, 2
        // Predicated region
        $region44: #{tpu_custom_call.1} parent=42 // pred_check
          %p403 = pneg %p68
        $region45: #{tpu_custom_call.1} parent=42 // pred_check_branch
          %405 = sbr.rel (%p403) target = $region47
        $region46: #{tpu_custom_call.1} parent=42 // pred_region
          %s406 = sand.u32 %s53, 1
          %s407 = scalar_lea.sflag [#allocation4], %s406
          %s408 = sand.u32 %s53, 1
          %s409 = smul.addr %s408, 16
          %s410 = scalar_lea.vmem [#allocation5], %s409
          %412 = dma.done %s407, 256
        $region47: #{tpu_custom_call.1} parent=42 // pred_fallthru
          _
      $region43: #{tpu_custom_call.1} parent=5 // pred_fallthru
        _
    $region6: #{tpu_custom_call.1} parent=1 // loop_footer
      %s17 = sadd.s32 1, %s13
    $region7: #{tpu_custom_call.1} parent=1 // loop_footer_branch
      %12 = sbr.rel target = $region3
    $region8: #{tpu_custom_call.1} parent=1 // loop_exit
      _
    %413 = vsyncpa [#allocation3], 1
    %s414 = scalar_lea.sflag [#allocation3], 1
    %415 = vsyncpa %s414, 1
    %416 = vsyncpa [#allocation4], 1
    %s417 = scalar_lea.sflag [#allocation4], 1
    %418 = vsyncpa %s417, 1

</llo_original>
